<compile_context>
chip_gen: v7x
topology: tpu7x:2x2x1
jax: 0.10.0
libtpu: 0.0.40
codegen_flags: <defaults>
</compile_context>

<pallas_src>
from math import sqrt

import jax
import jax.numpy as jnp
from jax.experimental import pallas as pl
from jax.experimental.pallas import tpu as pltpu


# --- bond feature dims (from allowable_features) ------------------------------
# possible_bond_type_list      -> 5
# possible_bond_stereo_list    -> 6
# possible_is_conjugated_list  -> 2
# possible_bond_dirs           -> 6
BOND_FEATURE_DIMS = [5, 6, 2, 6]

PACKED_ROWS = 128   # packed-table rows padded to one lane/MXU tile (K = 128)


def _round_up(x, m):
    return ((x + m - 1) // m) * m


# --- Pallas kernel (factory: offsets / padding are compile-time constants) ----
def _make_bond_encoder_kernel(feature_dims, padding):
    nfeat = len(feature_dims)
    sizes = [d + 1 if padding else d for d in feature_dims]
    starts = []
    row = 0
    for s in sizes:
        starts.append(row)
        row += s
    shift = 1 if padding else 0          # PyTorch's (edge_attr + 1) when padding
    sentinel = -(1 << 20)                # unused lanes can never match

    def kernel(idx_ref, table_ref, out_ref):
        """idx_ref:   (TE, F)          int32 raw edge_attr tile.
           table_ref: (PACKED_ROWS, D) f32 packed embedding table.
           out_ref:   (TE, D)          f32 summed embeddings."""
        rows = table_ref.shape[0]
        idx = idx_ref[...].astype(jnp.float32)                        # (TE, F)

        # Constant selector S[j, r] = 1 iff packed row r belongs to feature j.
        # Built from iotas + static scalars (less than a vreg of work).
        r_jr = jax.lax.broadcasted_iota(jnp.int32, (nfeat, rows), 1)
        f_jr = jax.lax.broadcasted_iota(jnp.int32, (nfeat, rows), 0)
        lower = jnp.full((nfeat, rows), starts[-1], jnp.int32)
        upper = jnp.full((nfeat, rows), starts[-1] + sizes[-1], jnp.int32)
        for j in range(nfeat - 1):                                    # static F
            lower = jnp.where(f_jr == j, starts[j], lower)
            upper = jnp.where(f_jr == j, starts[j] + sizes[j], upper)
        sel = ((r_jr >= lower) & (r_jr < upper)).astype(jnp.float32)  # (F, rows)

        # Constant per-lane local index: loc[r] = r - start(feature(r)) - shift
        # (sentinel on lanes past the packed rows so proj==0 never matches).
        r_1r = jax.lax.broadcasted_iota(jnp.int32, (1, rows), 1)
        base = jnp.full((1, rows), sentinel, jnp.int32)
        for j in range(nfeat):
            in_j = (r_1r >= starts[j]) & (r_1r < starts[j] + sizes[j])
            base = jnp.where(in_j, starts[j], base)
        loc = (r_1r - base - shift).astype(jnp.float32)               # (1, rows)

        # Expansion matmul (MXU, K=F): proj[e, r] = idx[e, feature(r)].
        # Values are small exact integers -> default precision is exact here.
        proj = jnp.dot(idx, sel, preferred_element_type=jnp.float32)  # (TE, rows)

        # Multi-hot counts: 1 exactly at r = start(j) + idx[e, j] + shift.
        counts = (proj == loc).astype(jnp.float32)                    # (TE, rows)

        # Gather + sum over features as one MXU matmul (counts are 0/1).
        # HIGHEST precision keeps the gathered f32 table rows exact.
        out_ref[...] = jnp.dot(counts, table_ref[...],
                               preferred_element_type=jnp.float32,
                               precision=jax.lax.Precision.HIGHEST)

    return kernel


# --- params init --------------------------------------------------------------
def init_bond_encoder_params(key, emb_dim, padding=False):
    """Xavier-uniform init of the 4 embedding tables, packed and row-padded to
    PACKED_ROWS once at init. Returns (packed_table, offsets); offsets are only
    needed by the pure-JAX reference (the kernel bakes them as constants)."""
    tables, offsets = [], []
    row = 0
    for dim in BOND_FEATURE_DIMS:
        key, sub = jax.random.split(key)
        n_rows = dim + 1 if padding else dim
        bound = sqrt(6.0 / (n_rows + emb_dim))
        w = jax.random.uniform(sub, (n_rows, emb_dim), jnp.float32,
                               minval=-bound, maxval=bound)
        if padding:
            w = w.at[0].set(0.0)            # padding_idx=0 -> zero row
        tables.append(w)
        offsets.append(row)
        row += n_rows
    assert row <= PACKED_ROWS
    packed = jnp.zeros((PACKED_ROWS, emb_dim), jnp.float32)
    packed = packed.at[:row].set(jnp.concatenate(tables, axis=0))
    return packed, jnp.asarray(offsets, jnp.int32)


# --- wrapper ------------------------------------------------------------------
def bond_encoder_forward(edge_attr, packed_table, padding=False, tile_e=2048):
    """edge_attr: (E, 4) int -> (E, emb_dim) float32 (sum of 4 embeddings).

    tile_e: target edge-tile size. 2048 amortizes per-grid-step overhead and
    stays well under the v5e 16 MiB scoped-VMEM default; the tile is capped at
    ceil(E/2) (rounded to 8) so the 1-D "parallel" grid has >= 2 steps and both
    v7x TensorCores get work. Ragged E is handled by the cdiv grid (masked
    tail-block stores) -- no wrapper-side padding or output slicing.
    """
    e, f = edge_attr.shape
    rows, d = packed_table.shape

    tile = max(8, min(_round_up(tile_e, 8), _round_up(pl.cdiv(e, 2), 8)))
    grid = (pl.cdiv(e, tile),)

    kernel = _make_bond_encoder_kernel(BOND_FEATURE_DIMS, padding)

    return pl.pallas_call(
        kernel,
        out_shape=jax.ShapeDtypeStruct((e, d), jnp.float32),
        grid=grid,
        in_specs=[
            pl.BlockSpec((tile, f), lambda i: (i, 0)),   # edge_attr tile
            pl.BlockSpec((rows, d), lambda i: (0, 0)),   # whole packed table
        ],
        out_specs=pl.BlockSpec((tile, d), lambda i: (i, 0)),
        compiler_params=pltpu.CompilerParams(
            dimension_semantics=("parallel",)),
    )(edge_attr.astype(jnp.int32), packed_table)


# --- reference (plain JAX) ----------------------------------------------------
def bond_encoder_ref(edge_attr, packed_table, offsets, padding=False):
    idx = edge_attr.astype(jnp.int32)
    if padding:
        idx = idx + 1
    idx = idx + offsets[None, :]
    return packed_table[idx].sum(axis=1)    # (E, F, D) -> (E, D)


if __name__ == "__main__":
    emb_dim = 32

    # --- case 1: padding=False, E=64 (2 even grid steps) ----------------------
    E = 64
    key = jax.random.PRNGKey(0)
    pkey, ikey = jax.random.split(key)
    packed_table, offsets = init_bond_encoder_params(pkey, emb_dim,
                                                     padding=False)
    cols = []
    for dim in BOND_FEATURE_DIMS:
        ikey, sub = jax.random.split(ikey)
        cols.append(jax.random.randint(sub, (E, 1), 0, dim, dtype=jnp.int32))
    edge_attr = jnp.concatenate(cols, axis=1)       # (E, 4)

    out = bond_encoder_forward(edge_attr, packed_table, padding=False)
    out = jax.block_until_ready(out)
    ref = bond_encoder_ref(edge_attr, packed_table, offsets, padding=False)
    assert out.shape == (E, emb_dim)
    assert jnp.allclose(out, ref, atol=1e-5, rtol=1e-5)

    # --- case 2: padding=True, ragged E=50 (masked tail block) ----------------
    E2 = 50
    pkey2, ikey2 = jax.random.split(jax.random.PRNGKey(1))
    packed_table2, offsets2 = init_bond_encoder_params(pkey2, emb_dim,
                                                       padding=True)
    cols2 = []
    for dim in BOND_FEATURE_DIMS:
        ikey2, sub = jax.random.split(ikey2)
        cols2.append(jax.random.randint(sub, (E2, 1), -1, dim,
                                        dtype=jnp.int32))   # -1 -> padding row
    edge_attr2 = jnp.concatenate(cols2, axis=1)     # (E2, 4)

    out2 = bond_encoder_forward(edge_attr2, packed_table2, padding=True)
    out2 = jax.block_until_ready(out2)
    ref2 = bond_encoder_ref(edge_attr2, packed_table2, offsets2, padding=True)
    assert out2.shape == (E2, emb_dim)
    assert jnp.allclose(out2, ref2, atol=1e-5, rtol=1e-5)

    print("KERNEL_OK")
</pallas_src>

<mosaic_0001>
module attributes {stable_mosaic.version = 11 : i64} {
  func.func @kernel(%arg0: i32, %arg1: memref<32x4xi32, #tpu.memory_space<vmem>>, %arg2: memref<128x32xf32, #tpu.memory_space<vmem>>, %arg3: memref<32x32xf32, #tpu.memory_space<vmem>>) attributes {dimension_semantics = [#tpu.dimension_semantics<parallel>], iteration_bounds = array<i64: 2>, scalar_prefetch = 0 : i64, scratch_operands = 0 : i64, tpu.core_type = #tpu.core_type<tc>, window_params = [{transform_indices = @transform_0, window_bounds = array<i64: 32, 4>}, {pipeline_mode = #tpu.pipeline_mode<synchronous>, transform_indices = @transform_1, window_bounds = array<i64: 128, 32>}, {transform_indices = @transform_2, window_bounds = array<i64: 32, 32>}]} {
    %c0 = arith.constant 0 : index
    %c0_0 = arith.constant 0 : index
    %0 = vector.load %arg1[%c0, %c0_0] : memref<32x4xi32, #tpu.memory_space<vmem>>, vector<32x4xi32>
    %1 = arith.sitofp %0 : vector<32x4xi32> to vector<32x4xf32>
    %2 = tpu.iota {dimensions = array<i32: 1>} : vector<4x128xi32>
    %3 = tpu.iota {dimensions = array<i32: 0>} : vector<4x128xi32>
    %c13_i32 = arith.constant 13 : i32
    %4 = vector.broadcast %c13_i32 : i32 to vector<4x128xi32>
    %c19_i32 = arith.constant 19 : i32
    %5 = vector.broadcast %c19_i32 : i32 to vector<4x128xi32>
    %c0_i32 = arith.constant 0 : i32
    %6 = vector.broadcast %c0_i32 : i32 to vector<4x128xi32>
    %7 = arith.cmpi eq, %3, %6 : vector<4x128xi32>
    %c0_i32_1 = arith.constant 0 : i32
    %8 = vector.broadcast %c0_i32_1 : i32 to vector<4x128xi32>
    %9 = arith.select %7, %8, %4 : vector<4x128xi1>, vector<4x128xi32>
    %c0_i32_2 = arith.constant 0 : i32
    %10 = vector.broadcast %c0_i32_2 : i32 to vector<4x128xi32>
    %11 = arith.cmpi eq, %3, %10 : vector<4x128xi32>
    %c5_i32 = arith.constant 5 : i32
    %12 = vector.broadcast %c5_i32 : i32 to vector<4x128xi32>
    %13 = arith.select %11, %12, %5 : vector<4x128xi1>, vector<4x128xi32>
    %c1_i32 = arith.constant 1 : i32
    %14 = vector.broadcast %c1_i32 : i32 to vector<4x128xi32>
    %15 = arith.cmpi eq, %3, %14 : vector<4x128xi32>
    %c5_i32_3 = arith.constant 5 : i32
    %16 = vector.broadcast %c5_i32_3 : i32 to vector<4x128xi32>
    %17 = arith.select %15, %16, %9 : vector<4x128xi1>, vector<4x128xi32>
    %c1_i32_4 = arith.constant 1 : i32
    %18 = vector.broadcast %c1_i32_4 : i32 to vector<4x128xi32>
    %19 = arith.cmpi eq, %3, %18 : vector<4x128xi32>
    %c11_i32 = arith.constant 11 : i32
    %20 = vector.broadcast %c11_i32 : i32 to vector<4x128xi32>
    %21 = arith.select %19, %20, %13 : vector<4x128xi1>, vector<4x128xi32>
    %c2_i32 = arith.constant 2 : i32
    %22 = vector.broadcast %c2_i32 : i32 to vector<4x128xi32>
    %23 = arith.cmpi eq, %3, %22 : vector<4x128xi32>
    %c11_i32_5 = arith.constant 11 : i32
    %24 = vector.broadcast %c11_i32_5 : i32 to vector<4x128xi32>
    %25 = arith.select %23, %24, %17 : vector<4x128xi1>, vector<4x128xi32>
    %c2_i32_6 = arith.constant 2 : i32
    %26 = vector.broadcast %c2_i32_6 : i32 to vector<4x128xi32>
    %27 = arith.cmpi eq, %3, %26 : vector<4x128xi32>
    %c13_i32_7 = arith.constant 13 : i32
    %28 = vector.broadcast %c13_i32_7 : i32 to vector<4x128xi32>
    %29 = arith.select %27, %28, %21 : vector<4x128xi1>, vector<4x128xi32>
    %30 = arith.cmpi sge, %2, %25 : vector<4x128xi32>
    %31 = arith.cmpi slt, %2, %29 : vector<4x128xi32>
    %32 = arith.andi %30, %31 : vector<4x128xi1>
    %33 = arith.extui %32 : vector<4x128xi1> to vector<4x128xi32>
    %34 = arith.sitofp %33 : vector<4x128xi32> to vector<4x128xf32>
    %35 = tpu.iota {dimensions = array<i32: 1>} : vector<1x128xi32>
    %c-1048576_i32 = arith.constant -1048576 : i32
    %36 = vector.broadcast %c-1048576_i32 : i32 to vector<1x128xi32>
    %c0_i32_8 = arith.constant 0 : i32
    %37 = vector.broadcast %c0_i32_8 : i32 to vector<1x128xi32>
    %38 = arith.cmpi sge, %35, %37 : vector<1x128xi32>
    %c5_i32_9 = arith.constant 5 : i32
    %39 = vector.broadcast %c5_i32_9 : i32 to vector<1x128xi32>
    %40 = arith.cmpi slt, %35, %39 : vector<1x128xi32>
    %41 = arith.andi %38, %40 : vector<1x128xi1>
    %c0_i32_10 = arith.constant 0 : i32
    %42 = vector.broadcast %c0_i32_10 : i32 to vector<1x128xi32>
    %43 = arith.select %41, %42, %36 : vector<1x128xi1>, vector<1x128xi32>
    %c5_i32_11 = arith.constant 5 : i32
    %44 = vector.broadcast %c5_i32_11 : i32 to vector<1x128xi32>
    %45 = arith.cmpi sge, %35, %44 : vector<1x128xi32>
    %c11_i32_12 = arith.constant 11 : i32
    %46 = vector.broadcast %c11_i32_12 : i32 to vector<1x128xi32>
    %47 = arith.cmpi slt, %35, %46 : vector<1x128xi32>
    %48 = arith.andi %45, %47 : vector<1x128xi1>
    %c5_i32_13 = arith.constant 5 : i32
    %49 = vector.broadcast %c5_i32_13 : i32 to vector<1x128xi32>
    %50 = arith.select %48, %49, %43 : vector<1x128xi1>, vector<1x128xi32>
    %c11_i32_14 = arith.constant 11 : i32
    %51 = vector.broadcast %c11_i32_14 : i32 to vector<1x128xi32>
    %52 = arith.cmpi sge, %35, %51 : vector<1x128xi32>
    %c13_i32_15 = arith.constant 13 : i32
    %53 = vector.broadcast %c13_i32_15 : i32 to vector<1x128xi32>
    %54 = arith.cmpi slt, %35, %53 : vector<1x128xi32>
    %55 = arith.andi %52, %54 : vector<1x128xi1>
    %c11_i32_16 = arith.constant 11 : i32
    %56 = vector.broadcast %c11_i32_16 : i32 to vector<1x128xi32>
    %57 = arith.select %55, %56, %50 : vector<1x128xi1>, vector<1x128xi32>
    %c13_i32_17 = arith.constant 13 : i32
    %58 = vector.broadcast %c13_i32_17 : i32 to vector<1x128xi32>
    %59 = arith.cmpi sge, %35, %58 : vector<1x128xi32>
    %c19_i32_18 = arith.constant 19 : i32
    %60 = vector.broadcast %c19_i32_18 : i32 to vector<1x128xi32>
    %61 = arith.cmpi slt, %35, %60 : vector<1x128xi32>
    %62 = arith.andi %59, %61 : vector<1x128xi1>
    %c13_i32_19 = arith.constant 13 : i32
    %63 = vector.broadcast %c13_i32_19 : i32 to vector<1x128xi32>
    %64 = arith.select %62, %63, %57 : vector<1x128xi1>, vector<1x128xi32>
    %65 = arith.subi %35, %64 : vector<1x128xi32>
    %c0_i32_20 = arith.constant 0 : i32
    %66 = vector.broadcast %c0_i32_20 : i32 to vector<1x128xi32>
    %67 = arith.subi %65, %66 : vector<1x128xi32>
    %68 = arith.sitofp %67 : vector<1x128xi32> to vector<1x128xf32>
    %cst = arith.constant dense<0.000000e+00> : vector<32x128xf32>
    %69 = tpu.matmul %1, %34, %cst {dimension_numbers = #tpu.dot_dimension_numbers<[1], [0], [0], [1], [0, 0, 1, 1], [], []>} : vector<32x4xf32>, vector<4x128xf32>, vector<32x128xf32> -> vector<32x128xf32>
    %70 = vector.broadcast %68 : vector<1x128xf32> to vector<32x128xf32>
    %71 = arith.cmpf oeq, %69, %70 : vector<32x128xf32>
    %72 = arith.extui %71 : vector<32x128xi1> to vector<32x128xi32>
    %73 = arith.sitofp %72 : vector<32x128xi32> to vector<32x128xf32>
    %c0_21 = arith.constant 0 : index
    %c0_22 = arith.constant 0 : index
    %74 = vector.load %arg2[%c0_21, %c0_22] : memref<128x32xf32, #tpu.memory_space<vmem>>, vector<128x32xf32>
    %cst_23 = arith.constant dense<0.000000e+00> : vector<32x32xf32>
    %75 = tpu.matmul %73, %74, %cst_23 {dimension_numbers = #tpu.dot_dimension_numbers<[1], [0], [0], [1], [0, 0, 1, 1], [], []>, precision = #tpu.contract_precision<fp32>} : vector<32x128xf32>, vector<128x32xf32>, vector<32x32xf32> -> vector<32x32xf32>
    %c0_24 = arith.constant 0 : index
    %c0_25 = arith.constant 0 : index
    %76 = vector.load %arg3[%c0_24, %c0_25] : memref<32x32xf32, #tpu.memory_space<vmem>>, vector<32x32xf32>
    tpu.vector_store %arg3[%c0_24, %c0_25], %75 {strides = array<i32>} : memref<32x32xf32, #tpu.memory_space<vmem>>, vector<32x32xf32>,
    return
  }
  func.func @transform_0(%arg0: i32) -> (i32, i32) {
    %c0_i32 = arith.constant 0 : i32
    %c0_i32_0 = arith.constant 0 : i32
    return %arg0, %c0_i32 : i32, i32
  }
  func.func @transform_1(%arg0: i32) -> (i32, i32) {
    %c0_i32 = arith.constant 0 : i32
    %c0_i32_0 = arith.constant 0 : i32
    %c0_i32_1 = arith.constant 0 : i32
    return %c0_i32, %c0_i32_0 : i32, i32
  }
  func.func @transform_2(%arg0: i32) -> (i32, i32) {
    %c0_i32 = arith.constant 0 : i32
    %c0_i32_0 = arith.constant 0 : i32
    return %arg0, %c0_i32 : i32, i32
  }
}

</mosaic_0001>

<llo_original>
// kernel: tpu_custom_call.1
$region0: #{tpu_custom_call.1}
  #allocation0 [shape = 'u32[]', space=smem, size = 0x4, offset = 0x4, fixed_abs, tag = 'smem constant byte address 0x4 - core index']
  #allocation1 [shape = 'u32[144,128]{1,0:T(1,128)}', space=vmem, size = 0x12000, scoped, tag = 'internal scratch']
  %s0 = inlined_call_operand.vmem [shape: s32[64,4], index: 0, kind: input, shape index: {}]
  %s1 = inlined_call_operand.vmem [shape: f32[128,32], index: 1, kind: input, shape index: {}]
  %s2 = inlined_call_operand.vmem [shape: f32[64,32], index: 2, kind: output, shape index: {}]
  %s3 = sld [smem:[#allocation0]]
  $region41: #{tpu_custom_call.1} parent=0
    _
  %s5 = ssub.s32 1, %s3
  %s6 = scalar_select 0, %s5, %s3
  loop: start=0, step=1, limit=4
  $region2: #{tpu_custom_call.1} parent=0 // loop_pre_header
    _
  $region3: #{tpu_custom_call.1} parent=0 // loop_header
    %s8 = sphi 0, %s12
    %p9 = scmp.ge.s32.totalorder %s8, 4
    %s18 = sphi 0, %s20
    %s21 = sphi 0, %s18
    %s22 = sphi 0, %s21
    %s38 = sphi 0, %s22
    %s42 = sphi 0, %s42
    %s44 = sphi 0, %s42
    %s45 = sphi 0, %s44
    %s59 = sphi 0, %s45
    %s65 = sphi 0, %s67
    %s68 = sphi 0, %s65
    %s69 = sphi 0, %s68
    %s85 = sphi 0, %s69
  $region4: #{tpu_custom_call.1} parent=0 // loop_header_branch
    %11 = sbr.rel (%p9) target = $region8
  $region5: #{tpu_custom_call.1} parent=0 // loop_body
    %s13 = ssub.s32 %s8, 1
    %s14 = ssub.s32 %s8, 2
    %s15 = sadd.s32 %s8, 1
    %s16 = ssub.s32 %s8, %s15
    %p17 = scmp.eq.s32.totalorder %s16, 0
    %s19 = sadd.s32 %s18, 1
    %s20 = scalar_select %p17, %s18, %s19
    %p23 = pneg %p17
    %p24 = scmp.eq.s32.totalorder %s8, 1
    %p25 = por %p23, %p24
    %p26 = scmp.ne.s32.totalorder %s18, %s21
    %p27 = scmp.eq.s32.totalorder %s8, 0
    %p28 = por %p26, %p27
    %p29 = scmp.ne.s32.totalorder %s18, %s21
    %p30 = scmp.eq.s32.totalorder %s13, 1
    %p31 = por %p29, %p30
    %p32 = scmp.ne.s32.totalorder %s21, %s22
    %p33 = scmp.eq.s32.totalorder %s13, 0
    %p34 = por %p32, %p33
    %p35 = scmp.ne.s32.totalorder %s21, %s22
    %p36 = scmp.eq.s32.totalorder %s14, 1
    %p37 = por %p35, %p36
    %p39 = scmp.ne.s32.totalorder %s22, %s38
    %p40 = scmp.eq.s32.totalorder %s14, 0
    %p41 = por %p39, %p40
    %s43 = sadd.s32 %s42, 1
    %p46 = scmp.eq.s32.totalorder %s8, 1
    %p47 = scmp.ne.s32.totalorder %s42, %s44
    %p48 = scmp.eq.s32.totalorder %s8, 0
    %p49 = por %p47, %p48
    %p50 = scmp.ne.s32.totalorder %s42, %s44
    %p51 = scmp.eq.s32.totalorder %s13, 1
    %p52 = por %p50, %p51
    %p53 = scmp.ne.s32.totalorder %s44, %s45
    %p54 = scmp.eq.s32.totalorder %s13, 0
    %p55 = por %p53, %p54
    %p56 = scmp.ne.s32.totalorder %s44, %s45
    %p57 = scmp.eq.s32.totalorder %s14, 1
    %p58 = por %p56, %p57
    %p60 = scmp.ne.s32.totalorder %s45, %s59
    %p61 = scmp.eq.s32.totalorder %s14, 0
    %p62 = por %p60, %p61
    %s63 = ssub.s32 %s8, %s15
    %p64 = scmp.eq.s32.totalorder %s63, 0
    %s66 = sadd.s32 %s65, 1
    %s67 = scalar_select %p64, %s65, %s66
    %p70 = pneg %p64
    %p71 = scmp.eq.s32.totalorder %s8, 1
    %p72 = por %p70, %p71
    %p73 = scmp.ne.s32.totalorder %s65, %s68
    %p74 = scmp.eq.s32.totalorder %s8, 0
    %p75 = por %p73, %p74
    %p76 = scmp.ne.s32.totalorder %s65, %s68
    %p77 = scmp.eq.s32.totalorder %s13, 1
    %p78 = por %p76, %p77
    %p79 = scmp.ne.s32.totalorder %s68, %s69
    %p80 = scmp.eq.s32.totalorder %s13, 0
    %p81 = por %p79, %p80
    %p82 = scmp.ne.s32.totalorder %s68, %s69
    %p83 = scmp.eq.s32.totalorder %s14, 1
    %p84 = por %p82, %p83
    %p86 = scmp.ne.s32.totalorder %s69, %s85
    %p87 = scmp.eq.s32.totalorder %s14, 0
    %p88 = por %p86, %p87
    %p89 = scmp.le.s32.totalorder 1, %s8
    %p90 = scmp.lt.s32.totalorder %s8, 3
    %p91 = pnand %p89, %p90
    %p92 = pneg %p91
    // Predicated region
    $region9: #{tpu_custom_call.1} parent=5 // pred_check
      _
    $region10: #{tpu_custom_call.1} parent=5 // pred_check_branch
      %94 = sbr.rel (%p91) target = $region12
    $region11: #{tpu_custom_call.1} parent=5 // pred_region
      %s95 = ssub.s32 %s8, 1
      // Predicated region
      $region13: #{tpu_custom_call.1} parent=11 // pred_check
        %p96 = pneg %p55
      $region14: #{tpu_custom_call.1} parent=11 // pred_check_branch
        %98 = sbr.rel (%p96) target = $region16
      $region15: #{tpu_custom_call.1} parent=11 // pred_region
        _
      $region16: #{tpu_custom_call.1} parent=11 // pred_fallthru
        _
    $region12: #{tpu_custom_call.1} parent=5 // pred_fallthru
      _
    %p99 = scmp.lt.s32.totalorder %s8, 2
    // Predicated region
    $region17: #{tpu_custom_call.1} parent=5 // pred_check
      %p100 = pneg %p99
    $region18: #{tpu_custom_call.1} parent=5 // pred_check_branch
      %102 = sbr.rel (%p100) target = $region20
    $region19: #{tpu_custom_call.1} parent=5 // pred_region
      // Predicated region
      $region21: #{tpu_custom_call.1} parent=19 // pred_check
        %p103 = pneg %p28
      $region22: #{tpu_custom_call.1} parent=19 // pred_check_branch
        %105 = sbr.rel (%p103) target = $region24
      $region23: #{tpu_custom_call.1} parent=19 // pred_region
        %s106 = smul.u32 4, %s8
        %p107 = scmp.lt.s32.totalorder %s106, 7
        %s108 = scalar_select %p107, %s106, 7
        %s109 = smul.addr %s108, 8
        %s110 = scalar_lea.vmem %s0, %s109
        %s111 = smul.u32 4, %s8
      $region24: #{tpu_custom_call.1} parent=19 // pred_fallthru
        _
    $region20: #{tpu_custom_call.1} parent=5 // pred_fallthru
      _
    %p112 = scmp.le.s32.totalorder 1, %s8
    %p113 = scmp.lt.s32.totalorder %s8, 3
    %p114 = pnand %p112, %p113
    %p115 = pneg %p114
    // Predicated region
    $region25: #{tpu_custom_call.1} parent=5 // pred_check
      _
    $region26: #{tpu_custom_call.1} parent=5 // pred_check_branch
      %117 = sbr.rel (%p114) target = $region28
    $region27: #{tpu_custom_call.1} parent=5 // pred_region
      %s118 = ssub.s32 %s8, 1
      %s119 = smul.u32 4, %s13
      %p120 = scmp.lt.s32.totalorder %s119, 7
      %s121 = scalar_select %p120, %s119, 7
      %s122 = smul.addr %s121, 8
      %s123 = scalar_lea.vmem %s0, %s122
      %p124 = pneg %p34
      %p125 = pneg %p31
      %p126 = pneg %p55
      %p127 = pneg %p52
      %p128 = pneg %p81
      %p129 = pneg %p78
      %s130 = smul.u32 4, %s13
      %p131 = scmp.lt.s32.totalorder %s130, 7
      %s132 = scalar_select %p131, %s130, 7
      %s133 = smul.addr %s132, 8
      %s134 = scalar_lea.vmem %s2, %s133
      %s135 = smul.u32 4, %s13
      %p136 = scmp.lt.s32.totalorder %s135, 7
      %s137 = scalar_select %p136, %s135, 7
      %s138 = smul.addr %s137, 8
      %s139 = scalar_lea.vmem %s0, %s138
      %s140 = smul.u32 4, %s13
      %s141 = smul.u32 4, %s13
      %p142 = scmp.lt.s32.totalorder %s141, 7
      %s143 = scalar_select %p142, %s141, 7
      %s144 = smul.addr %s143, 8
      %s145 = scalar_lea.vmem %s2, %s144
      %s146 = smul.u32 4, %s13
      %v147 = vld [vmem:[%s139] sm:$0xff]
      %v148 = vld [vmem:[%s139 + $0x8] sm:$0xff]
      %v149 = vld [vmem:[%s139 + $0x10] sm:$0xff]
      %v150 = vld [vmem:[%s139 + $0x18] sm:$0xff]
      %v151 = vcvt.s32.f32 %v147
      %v152 = vcvt.s32.f32 %v148
      %v153 = vcvt.s32.f32 %v149
      %v154 = vcvt.s32.f32 %v150
      %v155 = vlaneseq
      %v156 = vand.u32 %v155, 127
      %v157 = vlaneseq
      %v158 = vshrl.u32 %v157, 7
      %vm159 = vcmp.eq.s32.totalorder %v158, 0
      %v160 = vsel %vm159, 0, 13
      %v161 = vsel %vm159, 5, 19
      %vm162 = vcmp.eq.s32.totalorder %v158, 1
      %v163 = vsel %vm162, 5, %v160
      %v164 = vsel %vm162, 11, %v161
      %vm165 = vcmp.eq.s32.totalorder %v158, 2
      %v166 = vsel %vm165, 11, %v163
      %v167 = vsel %vm165, 13, %v164
      %vm168 = vcmp.ge.s32.totalorder %v156, %v166
      %vm169 = vcmp.lt.s32.totalorder %v156, %v167
      %vm170 = vmand %vm168, %vm169
      %v171 = vsel %vm170, 1, 0
      %v172 = vcvt.s32.f32 %v171
      %vm173 = vcmp.ge.s32.totalorder %v156, 0
      %vm174 = vcmp.lt.s32.totalorder %v156, 5
      %vm175 = vmand %vm173, %vm174
      %v176 = vsel %vm175, 0, 4293918720
      %vm177 = vcmp.ge.s32.totalorder %v156, 5
      %vm178 = vcmp.lt.s32.totalorder %v156, 11
      %vm179 = vmand %vm177, %vm178
      %v180 = vsel %vm179, 5, %v176
      %vm181 = vcmp.ge.s32.totalorder %v156, 11
      %vm182 = vcmp.lt.s32.totalorder %v156, 13
      %vm183 = vmand %vm181, %vm182
      %v184 = vsel %vm183, 11, %v180
      %vm185 = vcmp.ge.s32.totalorder %v156, 13
      %vm186 = vcmp.lt.s32.totalorder %v156, 19
      %vm187 = vmand %vm185, %vm186
      %v188 = vsel %vm187, 13, %v184
      %v189 = vsub.s32 %v156, %v188
      %v190 = vcvt.s32.f32 %v189
      %vm191 = vcmask 31744
      %v193 = vsel %vm191, %v151, 0
      %v196 = vsel %vm191, %v152, 0
      %v199 = vsel %vm191, %v153, 0
      %v202 = vsel %vm191, %v154, 0
      %vm204 = vcmask 1043456
      %v206 = vsel %vm204, %v172, 0
      %208 = vmatprep.subr.mxu0 0.0
      %209 = vmatpush1.msra.mxu0 %v206
      %210 = vmatprep.subr.mxu0 0.0
      %211 = vmatpush1.msra.mxu0 0.0
      %212 = vmatprep.subr.mxu0 0.0
      %213 = vmatpush1.msra.mxu0 0.0
      %214 = vmatprep.subr.mxu0 0.0
      %215 = vmatpush1.msra.mxu0 0.0
      %216 = vmatprep.subr.mxu0 0.0
      %217 = vmatpush1.msra.mxu0 0.0
      %218 = vmatprep.subr.mxu0 0.0
      %219 = vmatpush1.msra.mxu0 0.0
      %220 = vmatprep.subr.mxu0 0.0
      %221 = vmatpush1.msra.mxu0 0.0
      %222 = vmatprep.subr.mxu0 0.0
      %223 = vmatpush1.msra.mxu0 0.0
      %224 = vmatprep.subr.mxu0 0.0
      %225 = vmatpush1.msra.mxu0 0.0
      %226 = vmatprep.subr.mxu0 0.0
      %227 = vmatpush1.msra.mxu0 0.0
      %228 = vmatprep.subr.mxu0 0.0
      %229 = vmatpush1.msra.mxu0 0.0
      %230 = vmatprep.subr.mxu0 0.0
      %231 = vmatpush1.msra.mxu0 0.0
      %232 = vmatprep.subr.mxu0 0.0
      %233 = vmatpush1.msra.mxu0 0.0
      %234 = vmatprep.subr.mxu0 0.0
      %235 = vmatpush1.msra.mxu0 0.0
      %236 = vmatprep.subr.mxu0 0.0
      %237 = vmatpush1.msra.mxu0 0.0
      %238 = vmatprep.subr.mxu0 0.0
      %239 = vmatpush1.msra.mxu0 0.0
      %240 = vmatprep.subr.mxu0 0.0
      %241 = vmatpush1.msra.mxu0 0.0
      %242 = vmatprep.subr.mxu0 0.0
      %243 = vmatpush1.msra.mxu0 0.0
      %244 = vmatprep.subr.mxu0 0.0
      %245 = vmatpush1.msra.mxu0 0.0
      %246 = vmatprep.subr.mxu0 0.0
      %247 = vmatpush1.msra.mxu0 0.0
      %248 = vmatprep.subr.mxu0 0.0
      %249 = vmatpush1.msra.mxu0 0.0
      %250 = vmatprep.subr.mxu0 0.0
      %251 = vmatpush1.msra.mxu0 0.0
      %252 = vmatprep.subr.mxu0 0.0
      %253 = vmatpush1.msra.mxu0 0.0
      %254 = vmatprep.subr.mxu0 0.0
      %255 = vmatpush1.msra.mxu0 0.0
      %256 = vmatprep.subr.mxu0 0.0
      %257 = vmatpush1.msra.mxu0 0.0
      %258 = vmatprep.subr.mxu0 0.0
      %259 = vmatpush1.msra.mxu0 0.0
      %260 = vmatprep.subr.mxu0 0.0
      %261 = vmatpush1.msra.mxu0 0.0
      %262 = vmatprep.subr.mxu0 0.0
      %263 = vmatpush1.msra.mxu0 0.0
      %264 = vmatprep.subr.mxu0 0.0
      %265 = vmatpush1.msra.mxu0 0.0
      %266 = vmatprep.subr.mxu0 0.0
      %267 = vmatpush1.msra.mxu0 0.0
      %268 = vmatprep.subr.mxu0 0.0
      %269 = vmatpush1.msra.mxu0 0.0
      %270 = vmatprep.subr.mxu0 0.0
      %271 = vmatpush1.msra.mxu0 0.0
      %272 = vmatprep.mubr.f32.mxu0 0.0
      %273 = vmatmul.mubr.f32.gmra.mrb[0].mxu0 %v193
      %v274 = vpop.f32.mrb[0].mxu0
      %v275 = vadd.f32 0.0, %v274
      %v276 = vpop.f32.mrb[0].mxu0
      %277 = vmatprep.mubr.f32.mxu0 0.0
      %278 = vmatmul.mubr.f32.gmra.mrb[0].mxu0 %v196
      %v279 = vpop.f32.mrb[0].mxu0
      %v280 = vadd.f32 0.0, %v279
      %v281 = vpop.f32.mrb[0].mxu0
      %282 = vmatprep.mubr.f32.mxu0 0.0
      %283 = vmatmul.mubr.f32.gmra.mrb[0].mxu0 %v199
      %v284 = vpop.f32.mrb[0].mxu0
      %v285 = vadd.f32 0.0, %v284
      %v286 = vpop.f32.mrb[0].mxu0
      %287 = vmatprep.mubr.f32.mxu0 0.0
      %288 = vmatmul.mubr.f32.gmra.mrb[0].mxu0 %v202
      %v289 = vpop.f32.mrb[0].mxu0
      %v290 = vadd.f32 0.0, %v289
      %v291 = vpop.f32.mrb[0].mxu0
      %292 = vdwg.mxu0
      %vm293 = vcmp.eq.f32.partialorder %v275, %v190
      %vm294 = vcmp.eq.f32.partialorder %v280, %v190
      %vm295 = vcmp.eq.f32.partialorder %v285, %v190
      %vm296 = vcmp.eq.f32.partialorder %v290, %v190
      %v297 = vsel %vm293, 1, 0
      %v298 = vsel %vm294, 1, 0
      %v299 = vsel %vm295, 1, 0
      %v300 = vsel %vm296, 1, 0
      %v301 = vcvt.s32.f32 %v297
      %v302 = vcvt.s32.f32 %v298
      %v303 = vcvt.s32.f32 %v299
      %v304 = vcvt.s32.f32 %v300
      %v305 = vld [vmem:[%s1] sm:$0xff]
      %v306 = vld [vmem:[%s1 + $0x8] sm:$0xff]
      %v307 = vld [vmem:[%s1 + $0x10] sm:$0xff]
      %v308 = vld [vmem:[%s1 + $0x18] sm:$0xff]
      %v309 = vld [vmem:[%s1 + $0x20] sm:$0xff]
      %v310 = vld [vmem:[%s1 + $0x28] sm:$0xff]
      %v311 = vld [vmem:[%s1 + $0x30] sm:$0xff]
      %v312 = vld [vmem:[%s1 + $0x38] sm:$0xff]
      %v313 = vld [vmem:[%s1 + $0x40] sm:$0xff]
      %v314 = vld [vmem:[%s1 + $0x48] sm:$0xff]
      %v315 = vld [vmem:[%s1 + $0x50] sm:$0xff]
      %v316 = vld [vmem:[%s1 + $0x58] sm:$0xff]
      %v317 = vld [vmem:[%s1 + $0x60] sm:$0xff]
      %v318 = vld [vmem:[%s1 + $0x68] sm:$0xff]
      %v319 = vld [vmem:[%s1 + $0x70] sm:$0xff]
      %v320 = vld [vmem:[%s1 + $0x78] sm:$0xff]
      %321 = vmatprep.subr.mxu0 0.0
      %v322 = vand.u32 %v305, 4294901760
      %323 = vmatpush1.msra.mxu0 %v322
      %324 = vmatprep.subr.mxu0 0.0
      %v325 = vand.u32 %v306, 4294901760
      %326 = vmatpush1.msra.mxu0 %v325
      %327 = vmatprep.subr.mxu0 0.0
      %v328 = vand.u32 %v307, 4294901760
      %329 = vmatpush1.msra.mxu0 %v328
      %330 = vmatprep.subr.mxu0 0.0
      %v331 = vand.u32 %v308, 4294901760
      %332 = vmatpush1.msra.mxu0 %v331
      %333 = vmatprep.subr.mxu0 0.0
      %v334 = vand.u32 %v309, 4294901760
      %335 = vmatpush1.msra.mxu0 %v334
      %336 = vmatprep.subr.mxu0 0.0
      %v337 = vand.u32 %v310, 4294901760
      %338 = vmatpush1.msra.mxu0 %v337
      %339 = vmatprep.subr.mxu0 0.0
      %v340 = vand.u32 %v311, 4294901760
      %341 = vmatpush1.msra.mxu0 %v340
      %342 = vmatprep.subr.mxu0 0.0
      %v343 = vand.u32 %v312, 4294901760
      %344 = vmatpush1.msra.mxu0 %v343
      %345 = vmatprep.subr.mxu0 0.0
      %v346 = vand.u32 %v313, 4294901760
      %347 = vmatpush1.msra.mxu0 %v346
      %348 = vmatprep.subr.mxu0 0.0
      %v349 = vand.u32 %v314, 4294901760
      %350 = vmatpush1.msra.mxu0 %v349
      %351 = vmatprep.subr.mxu0 0.0
      %v352 = vand.u32 %v315, 4294901760
      %353 = vmatpush1.msra.mxu0 %v352
      %354 = vmatprep.subr.mxu0 0.0
      %v355 = vand.u32 %v316, 4294901760
      %356 = vmatpush1.msra.mxu0 %v355
      %357 = vmatprep.subr.mxu0 0.0
      %v358 = vand.u32 %v317, 4294901760
      %359 = vmatpush1.msra.mxu0 %v358
      %360 = vmatprep.subr.mxu0 0.0
      %v361 = vand.u32 %v318, 4294901760
      %362 = vmatpush1.msra.mxu0 %v361
      %363 = vmatprep.subr.mxu0 0.0
      %v364 = vand.u32 %v319, 4294901760
      %365 = vmatpush1.msra.mxu0 %v364
      %366 = vmatprep.subr.mxu0 0.0
      %v367 = vand.u32 %v320, 4294901760
      %368 = vmatpush1.msra.mxu0 %v367
      %369 = vmatprep.subr.mxu0 0.0
      %370 = vmatpush1.msra.mxu0 0.0
      %371 = vmatprep.subr.mxu0 0.0
      %372 = vmatpush1.msra.mxu0 0.0
      %373 = vmatprep.subr.mxu0 0.0
      %374 = vmatpush1.msra.mxu0 0.0
      %375 = vmatprep.subr.mxu0 0.0
      %376 = vmatpush1.msra.mxu0 0.0
      %377 = vmatprep.subr.mxu0 0.0
      %378 = vmatpush1.msra.mxu0 0.0
      %379 = vmatprep.subr.mxu0 0.0
      %380 = vmatpush1.msra.mxu0 0.0
      %381 = vmatprep.subr.mxu0 0.0
      %382 = vmatpush1.msra.mxu0 0.0
      %383 = vmatprep.subr.mxu0 0.0
      %384 = vmatpush1.msra.mxu0 0.0
      %385 = vmatprep.subr.mxu0 0.0
      %386 = vmatpush1.msra.mxu0 0.0
      %387 = vmatprep.subr.mxu0 0.0
      %388 = vmatpush1.msra.mxu0 0.0
      %389 = vmatprep.subr.mxu0 0.0
      %390 = vmatpush1.msra.mxu0 0.0
      %391 = vmatprep.subr.mxu0 0.0
      %392 = vmatpush1.msra.mxu0 0.0
      %393 = vmatprep.subr.mxu0 0.0
      %394 = vmatpush1.msra.mxu0 0.0
      %395 = vmatprep.subr.mxu0 0.0
      %396 = vmatpush1.msra.mxu0 0.0
      %397 = vmatprep.subr.mxu0 0.0
      %398 = vmatpush1.msra.mxu0 0.0
      %399 = vmatprep.subr.mxu0 0.0
      %400 = vmatpush1.msra.mxu0 0.0
      %401 = vmatprep.mubr.f32.mxu0 0.0
      %v402 = vand.u32 %v301, 4294901760
      %v403 = vsub.f32 %v301, %v402
      %v404 = vand.u32 %v403, 4294901760
      %v405 = vsub.f32 %v403, %v404
      %v406 = vand.u32 %v405, 4294901760
      %407 = vmatmul.mubr.f32.gmra.mrb[0].mxu0 %v406
      %v408 = vpop.f32.mrb[0].mxu0
      %v409 = vadd.f32 0.0, %v408
      %v410 = vpop.f32.mrb[0].mxu0
      %411 = vmatprep.mubr.f32.mxu0 0.0
      %v412 = vand.u32 %v302, 4294901760
      %v413 = vsub.f32 %v302, %v412
      %v414 = vand.u32 %v413, 4294901760
      %v415 = vsub.f32 %v413, %v414
      %v416 = vand.u32 %v415, 4294901760
      %417 = vmatmul.mubr.f32.gmra.mrb[0].mxu0 %v416
      %v418 = vpop.f32.mrb[0].mxu0
      %v419 = vadd.f32 0.0, %v418
      %v420 = vpop.f32.mrb[0].mxu0
      %421 = vmatprep.mubr.f32.mxu0 0.0
      %v422 = vand.u32 %v303, 4294901760
      %v423 = vsub.f32 %v303, %v422
      %v424 = vand.u32 %v423, 4294901760
      %v425 = vsub.f32 %v423, %v424
      %v426 = vand.u32 %v425, 4294901760
      %427 = vmatmul.mubr.f32.gmra.mrb[0].mxu0 %v426
      %v428 = vpop.f32.mrb[0].mxu0
      %v429 = vadd.f32 0.0, %v428
      %v430 = vpop.f32.mrb[0].mxu0
      %431 = vmatprep.mubr.f32.mxu0 0.0
      %v432 = vand.u32 %v304, 4294901760
      %v433 = vsub.f32 %v304, %v432
      %v434 = vand.u32 %v433, 4294901760
      %v435 = vsub.f32 %v433, %v434
      %v436 = vand.u32 %v435, 4294901760
      %437 = vmatmul.mubr.f32.gmra.mrb[0].mxu0 %v436
      %v438 = vpop.f32.mrb[0].mxu0
      %v439 = vadd.f32 0.0, %v438
      %v440 = vpop.f32.mrb[0].mxu0
      %441 = vdwg.mxu0
      %442 = vmatprep.subr.mxu0 0.0
      %v443 = vand.u32 %v305, 4294901760
      %v444 = vsub.f32 %v305, %v443
      %v445 = vand.u32 %v444, 4294901760
      %v446 = vsub.f32 %v444, %v445
      %v447 = vand.u32 %v446, 4294901760
      %448 = vmatpush1.msra.mxu0 %v447
      %449 = vmatprep.subr.mxu0 0.0
      %v450 = vand.u32 %v306, 4294901760
      %v451 = vsub.f32 %v306, %v450
      %v452 = vand.u32 %v451, 4294901760
      %v453 = vsub.f32 %v451, %v452
      %v454 = vand.u32 %v453, 4294901760
      %455 = vmatpush1.msra.mxu0 %v454
      %456 = vmatprep.subr.mxu0 0.0
      %v457 = vand.u32 %v307, 4294901760
      %v458 = vsub.f32 %v307, %v457
      %v459 = vand.u32 %v458, 4294901760
      %v460 = vsub.f32 %v458, %v459
      %v461 = vand.u32 %v460, 4294901760
      %462 = vmatpush1.msra.mxu0 %v461
      %463 = vmatprep.subr.mxu0 0.0
      %v464 = vand.u32 %v308, 4294901760
      %v465 = vsub.f32 %v308, %v464
      %v466 = vand.u32 %v465, 4294901760
      %v467 = vsub.f32 %v465, %v466
      %v468 = vand.u32 %v467, 4294901760
      %469 = vmatpush1.msra.mxu0 %v468
      %470 = vmatprep.subr.mxu0 0.0
      %v471 = vand.u32 %v309, 4294901760
      %v472 = vsub.f32 %v309, %v471
      %v473 = vand.u32 %v472, 4294901760
      %v474 = vsub.f32 %v472, %v473
      %v475 = vand.u32 %v474, 4294901760
      %476 = vmatpush1.msra.mxu0 %v475
      %477 = vmatprep.subr.mxu0 0.0
      %v478 = vand.u32 %v310, 4294901760
      %v479 = vsub.f32 %v310, %v478
      %v480 = vand.u32 %v479, 4294901760
      %v481 = vsub.f32 %v479, %v480
      %v482 = vand.u32 %v481, 4294901760
      %483 = vmatpush1.msra.mxu0 %v482
      %484 = vmatprep.subr.mxu0 0.0
      %v485 = vand.u32 %v311, 4294901760
      %v486 = vsub.f32 %v311, %v485
      %v487 = vand.u32 %v486, 4294901760
      %v488 = vsub.f32 %v486, %v487
      %v489 = vand.u32 %v488, 4294901760
      %490 = vmatpush1.msra.mxu0 %v489
      %491 = vmatprep.subr.mxu0 0.0
      %v492 = vand.u32 %v312, 4294901760
      %v493 = vsub.f32 %v312, %v492
      %v494 = vand.u32 %v493, 4294901760
      %v495 = vsub.f32 %v493, %v494
      %v496 = vand.u32 %v495, 4294901760
      %497 = vmatpush1.msra.mxu0 %v496
      %498 = vmatprep.subr.mxu0 0.0
      %v499 = vand.u32 %v313, 4294901760
      %v500 = vsub.f32 %v313, %v499
      %v501 = vand.u32 %v500, 4294901760
      %v502 = vsub.f32 %v500, %v501
      %v503 = vand.u32 %v502, 4294901760
      %504 = vmatpush1.msra.mxu0 %v503
      %505 = vmatprep.subr.mxu0 0.0
      %v506 = vand.u32 %v314, 4294901760
      %v507 = vsub.f32 %v314, %v506
      %v508 = vand.u32 %v507, 4294901760
      %v509 = vsub.f32 %v507, %v508
      %v510 = vand.u32 %v509, 4294901760
      %511 = vmatpush1.msra.mxu0 %v510
      %512 = vmatprep.subr.mxu0 0.0
      %v513 = vand.u32 %v315, 4294901760
      %v514 = vsub.f32 %v315, %v513
      %v515 = vand.u32 %v514, 4294901760
      %v516 = vsub.f32 %v514, %v515
      %v517 = vand.u32 %v516, 4294901760
      %518 = vmatpush1.msra.mxu0 %v517
      %519 = vmatprep.subr.mxu0 0.0
      %v520 = vand.u32 %v316, 4294901760
      %v521 = vsub.f32 %v316, %v520
      %v522 = vand.u32 %v521, 4294901760
      %v523 = vsub.f32 %v521, %v522
      %v524 = vand.u32 %v523, 4294901760
      %525 = vmatpush1.msra.mxu0 %v524
      %526 = vmatprep.subr.mxu0 0.0
      %v527 = vand.u32 %v317, 4294901760
      %v528 = vsub.f32 %v317, %v527
      %v529 = vand.u32 %v528, 4294901760
      %v530 = vsub.f32 %v528, %v529
      %v531 = vand.u32 %v530, 4294901760
      %532 = vmatpush1.msra.mxu0 %v531
      %533 = vmatprep.subr.mxu0 0.0
      %v534 = vand.u32 %v318, 4294901760
      %v535 = vsub.f32 %v318, %v534
      %v536 = vand.u32 %v535, 4294901760
      %v537 = vsub.f32 %v535, %v536
      %v538 = vand.u32 %v537, 4294901760
      %539 = vmatpush1.msra.mxu0 %v538
      %540 = vmatprep.subr.mxu0 0.0
      %v541 = vand.u32 %v319, 4294901760
      %v542 = vsub.f32 %v319, %v541
      %v543 = vand.u32 %v542, 4294901760
      %v544 = vsub.f32 %v542, %v543
      %v545 = vand.u32 %v544, 4294901760
      %546 = vmatpush1.msra.mxu0 %v545
      %547 = vmatprep.subr.mxu0 0.0
      %v548 = vand.u32 %v320, 4294901760
      %v549 = vsub.f32 %v320, %v548
      %v550 = vand.u32 %v549, 4294901760
      %v551 = vsub.f32 %v549, %v550
      %v552 = vand.u32 %v551, 4294901760
      %553 = vmatpush1.msra.mxu0 %v552
      %554 = vmatprep.subr.mxu0 0.0
      %555 = vmatpush1.msra.mxu0 0.0
      %556 = vmatprep.subr.mxu0 0.0
      %557 = vmatpush1.msra.mxu0 0.0
      %558 = vmatprep.subr.mxu0 0.0
      %559 = vmatpush1.msra.mxu0 0.0
      %560 = vmatprep.subr.mxu0 0.0
      %561 = vmatpush1.msra.mxu0 0.0
      %562 = vmatprep.subr.mxu0 0.0
      %563 = vmatpush1.msra.mxu0 0.0
      %564 = vmatprep.subr.mxu0 0.0
      %565 = vmatpush1.msra.mxu0 0.0
      %566 = vmatprep.subr.mxu0 0.0
      %567 = vmatpush1.msra.mxu0 0.0
      %568 = vmatprep.subr.mxu0 0.0
      %569 = vmatpush1.msra.mxu0 0.0
      %570 = vmatprep.subr.mxu0 0.0
      %571 = vmatpush1.msra.mxu0 0.0
      %572 = vmatprep.subr.mxu0 0.0
      %573 = vmatpush1.msra.mxu0 0.0
      %574 = vmatprep.subr.mxu0 0.0
      %575 = vmatpush1.msra.mxu0 0.0
      %576 = vmatprep.subr.mxu0 0.0
      %577 = vmatpush1.msra.mxu0 0.0
      %578 = vmatprep.subr.mxu0 0.0
      %579 = vmatpush1.msra.mxu0 0.0
      %580 = vmatprep.subr.mxu0 0.0
      %581 = vmatpush1.msra.mxu0 0.0
      %582 = vmatprep.subr.mxu0 0.0
      %583 = vmatpush1.msra.mxu0 0.0
      %584 = vmatprep.subr.mxu0 0.0
      %585 = vmatpush1.msra.mxu0 0.0
      %586 = vmatprep.mubr.f32.mxu0 0.0
      %v587 = vand.u32 %v301, 4294901760
      %588 = vmatmul.mubr.f32.gmra.mrb[0].mxu0 %v587
      %v589 = vpop.f32.mrb[0].mxu0
      %v590 = vadd.f32 %v409, %v589
      %v591 = vpop.f32.mrb[0].mxu0
      %592 = vmatprep.mubr.f32.mxu0 0.0
      %v593 = vand.u32 %v302, 4294901760
      %594 = vmatmul.mubr.f32.gmra.mrb[0].mxu0 %v593
      %v595 = vpop.f32.mrb[0].mxu0
      %v596 = vadd.f32 %v419, %v595
      %v597 = vpop.f32.mrb[0].mxu0
      %598 = vmatprep.mubr.f32.mxu0 0.0
      %v599 = vand.u32 %v303, 4294901760
      %600 = vmatmul.mubr.f32.gmra.mrb[0].mxu0 %v599
      %v601 = vpop.f32.mrb[0].mxu0
      %v602 = vadd.f32 %v429, %v601
      %v603 = vpop.f32.mrb[0].mxu0
      %604 = vmatprep.mubr.f32.mxu0 0.0
      %v605 = vand.u32 %v304, 4294901760
      %606 = vmatmul.mubr.f32.gmra.mrb[0].mxu0 %v605
      %v607 = vpop.f32.mrb[0].mxu0
      %v608 = vadd.f32 %v439, %v607
      %v609 = vpop.f32.mrb[0].mxu0
      %610 = vdwg.mxu0
      %611 = vmatprep.subr.mxu0 0.0
      %v612 = vand.u32 %v305, 4294901760
      %v613 = vsub.f32 %v305, %v612
      %614 = vmatpush1.msra.mxu0 %v613
      %615 = vmatprep.subr.mxu0 0.0
      %v616 = vand.u32 %v306, 4294901760
      %v617 = vsub.f32 %v306, %v616
      %618 = vmatpush1.msra.mxu0 %v617
      %619 = vmatprep.subr.mxu0 0.0
      %v620 = vand.u32 %v307, 4294901760
      %v621 = vsub.f32 %v307, %v620
      %622 = vmatpush1.msra.mxu0 %v621
      %623 = vmatprep.subr.mxu0 0.0
      %v624 = vand.u32 %v308, 4294901760
      %v625 = vsub.f32 %v308, %v624
      %626 = vmatpush1.msra.mxu0 %v625
      %627 = vmatprep.subr.mxu0 0.0
      %v628 = vand.u32 %v309, 4294901760
      %v629 = vsub.f32 %v309, %v628
      %630 = vmatpush1.msra.mxu0 %v629
      %631 = vmatprep.subr.mxu0 0.0
      %v632 = vand.u32 %v310, 4294901760
      %v633 = vsub.f32 %v310, %v632
      %634 = vmatpush1.msra.mxu0 %v633
      %635 = vmatprep.subr.mxu0 0.0
      %v636 = vand.u32 %v311, 4294901760
      %v637 = vsub.f32 %v311, %v636
      %638 = vmatpush1.msra.mxu0 %v637
      %639 = vmatprep.subr.mxu0 0.0
      %v640 = vand.u32 %v312, 4294901760
      %v641 = vsub.f32 %v312, %v640
      %642 = vmatpush1.msra.mxu0 %v641
      %643 = vmatprep.subr.mxu0 0.0
      %v644 = vand.u32 %v313, 4294901760
      %v645 = vsub.f32 %v313, %v644
      %646 = vmatpush1.msra.mxu0 %v645
      %647 = vmatprep.subr.mxu0 0.0
      %v648 = vand.u32 %v314, 4294901760
      %v649 = vsub.f32 %v314, %v648
      %650 = vmatpush1.msra.mxu0 %v649
      %651 = vmatprep.subr.mxu0 0.0
      %v652 = vand.u32 %v315, 4294901760
      %v653 = vsub.f32 %v315, %v652
      %654 = vmatpush1.msra.mxu0 %v653
      %655 = vmatprep.subr.mxu0 0.0
      %v656 = vand.u32 %v316, 4294901760
      %v657 = vsub.f32 %v316, %v656
      %658 = vmatpush1.msra.mxu0 %v657
      %659 = vmatprep.subr.mxu0 0.0
      %v660 = vand.u32 %v317, 4294901760
      %v661 = vsub.f32 %v317, %v660
      %662 = vmatpush1.msra.mxu0 %v661
      %663 = vmatprep.subr.mxu0 0.0
      %v664 = vand.u32 %v318, 4294901760
      %v665 = vsub.f32 %v318, %v664
      %666 = vmatpush1.msra.mxu0 %v665
      %667 = vmatprep.subr.mxu0 0.0
      %v668 = vand.u32 %v319, 4294901760
      %v669 = vsub.f32 %v319, %v668
      %670 = vmatpush1.msra.mxu0 %v669
      %671 = vmatprep.subr.mxu0 0.0
      %v672 = vand.u32 %v320, 4294901760
      %v673 = vsub.f32 %v320, %v672
      %674 = vmatpush1.msra.mxu0 %v673
      %675 = vmatprep.subr.mxu0 0.0
      %676 = vmatpush1.msra.mxu0 0.0
      %677 = vmatprep.subr.mxu0 0.0
      %678 = vmatpush1.msra.mxu0 0.0
      %679 = vmatprep.subr.mxu0 0.0
      %680 = vmatpush1.msra.mxu0 0.0
      %681 = vmatprep.subr.mxu0 0.0
      %682 = vmatpush1.msra.mxu0 0.0
      %683 = vmatprep.subr.mxu0 0.0
      %684 = vmatpush1.msra.mxu0 0.0
      %685 = vmatprep.subr.mxu0 0.0
      %686 = vmatpush1.msra.mxu0 0.0
      %687 = vmatprep.subr.mxu0 0.0
      %688 = vmatpush1.msra.mxu0 0.0
      %689 = vmatprep.subr.mxu0 0.0
      %690 = vmatpush1.msra.mxu0 0.0
      %691 = vmatprep.subr.mxu0 0.0
      %692 = vmatpush1.msra.mxu0 0.0
      %693 = vmatprep.subr.mxu0 0.0
      %694 = vmatpush1.msra.mxu0 0.0
      %695 = vmatprep.subr.mxu0 0.0
      %696 = vmatpush1.msra.mxu0 0.0
      %697 = vmatprep.subr.mxu0 0.0
      %698 = vmatpush1.msra.mxu0 0.0
      %699 = vmatprep.subr.mxu0 0.0
      %700 = vmatpush1.msra.mxu0 0.0
      %701 = vmatprep.subr.mxu0 0.0
      %702 = vmatpush1.msra.mxu0 0.0
      %703 = vmatprep.subr.mxu0 0.0
      %704 = vmatpush1.msra.mxu0 0.0
      %705 = vmatprep.subr.mxu0 0.0
      %706 = vmatpush1.msra.mxu0 0.0
      %707 = vmatprep.mubr.f32.mxu0 0.0
      %v708 = vand.u32 %v301, 4294901760
      %v709 = vsub.f32 %v301, %v708
      %710 = vmatmul.mubr.f32.gmra.mrb[0].mxu0 %v709
      %v711 = vpop.f32.mrb[0].mxu0
      %v712 = vadd.f32 %v590, %v711
      %v713 = vpop.f32.mrb[0].mxu0
      %714 = vmatprep.mubr.f32.mxu0 0.0
      %v715 = vand.u32 %v302, 4294901760
      %v716 = vsub.f32 %v302, %v715
      %717 = vmatmul.mubr.f32.gmra.mrb[0].mxu0 %v716
      %v718 = vpop.f32.mrb[0].mxu0
      %v719 = vadd.f32 %v596, %v718
      %v720 = vpop.f32.mrb[0].mxu0
      %721 = vmatprep.mubr.f32.mxu0 0.0
      %v722 = vand.u32 %v303, 4294901760
      %v723 = vsub.f32 %v303, %v722
      %724 = vmatmul.mubr.f32.gmra.mrb[0].mxu0 %v723
      %v725 = vpop.f32.mrb[0].mxu0
      %v726 = vadd.f32 %v602, %v725
      %v727 = vpop.f32.mrb[0].mxu0
      %728 = vmatprep.mubr.f32.mxu0 0.0
      %v729 = vand.u32 %v304, 4294901760
      %v730 = vsub.f32 %v304, %v729
      %731 = vmatmul.mubr.f32.gmra.mrb[0].mxu0 %v730
      %v732 = vpop.f32.mrb[0].mxu0
      %v733 = vadd.f32 %v608, %v732
      %v734 = vpop.f32.mrb[0].mxu0
      %735 = vdwg.mxu0
      %736 = vmatprep.subr.mxu0 0.0
      %v737 = vand.u32 %v305, 4294901760
      %738 = vmatpush1.msra.mxu0 %v737
      %739 = vmatprep.subr.mxu0 0.0
      %v740 = vand.u32 %v306, 4294901760
      %741 = vmatpush1.msra.mxu0 %v740
      %742 = vmatprep.subr.mxu0 0.0
      %v743 = vand.u32 %v307, 4294901760
      %744 = vmatpush1.msra.mxu0 %v743
      %745 = vmatprep.subr.mxu0 0.0
      %v746 = vand.u32 %v308, 4294901760
      %747 = vmatpush1.msra.mxu0 %v746
      %748 = vmatprep.subr.mxu0 0.0
      %v749 = vand.u32 %v309, 4294901760
      %750 = vmatpush1.msra.mxu0 %v749
      %751 = vmatprep.subr.mxu0 0.0
      %v752 = vand.u32 %v310, 4294901760
      %753 = vmatpush1.msra.mxu0 %v752
      %754 = vmatprep.subr.mxu0 0.0
      %v755 = vand.u32 %v311, 4294901760
      %756 = vmatpush1.msra.mxu0 %v755
      %757 = vmatprep.subr.mxu0 0.0
      %v758 = vand.u32 %v312, 4294901760
      %759 = vmatpush1.msra.mxu0 %v758
      %760 = vmatprep.subr.mxu0 0.0
      %v761 = vand.u32 %v313, 4294901760
      %762 = vmatpush1.msra.mxu0 %v761
      %763 = vmatprep.subr.mxu0 0.0
      %v764 = vand.u32 %v314, 4294901760
      %765 = vmatpush1.msra.mxu0 %v764
      %766 = vmatprep.subr.mxu0 0.0
      %v767 = vand.u32 %v315, 4294901760
      %768 = vmatpush1.msra.mxu0 %v767
      %769 = vmatprep.subr.mxu0 0.0
      %v770 = vand.u32 %v316, 4294901760
      %771 = vmatpush1.msra.mxu0 %v770
      %772 = vmatprep.subr.mxu0 0.0
      %v773 = vand.u32 %v317, 4294901760
      %774 = vmatpush1.msra.mxu0 %v773
      %775 = vmatprep.subr.mxu0 0.0
      %v776 = vand.u32 %v318, 4294901760
      %777 = vmatpush1.msra.mxu0 %v776
      %778 = vmatprep.subr.mxu0 0.0
      %v779 = vand.u32 %v319, 4294901760
      %780 = vmatpush1.msra.mxu0 %v779
      %781 = vmatprep.subr.mxu0 0.0
      %v782 = vand.u32 %v320, 4294901760
      %783 = vmatpush1.msra.mxu0 %v782
      %784 = vmatprep.subr.mxu0 0.0
      %785 = vmatpush1.msra.mxu0 0.0
      %786 = vmatprep.subr.mxu0 0.0
      %787 = vmatpush1.msra.mxu0 0.0
      %788 = vmatprep.subr.mxu0 0.0
      %789 = vmatpush1.msra.mxu0 0.0
      %790 = vmatprep.subr.mxu0 0.0
      %791 = vmatpush1.msra.mxu0 0.0
      %792 = vmatprep.subr.mxu0 0.0
      %793 = vmatpush1.msra.mxu0 0.0
      %794 = vmatprep.subr.mxu0 0.0
      %795 = vmatpush1.msra.mxu0 0.0
      %796 = vmatprep.subr.mxu0 0.0
      %797 = vmatpush1.msra.mxu0 0.0
      %798 = vmatprep.subr.mxu0 0.0
      %799 = vmatpush1.msra.mxu0 0.0
      %800 = vmatprep.subr.mxu0 0.0
      %801 = vmatpush1.msra.mxu0 0.0
      %802 = vmatprep.subr.mxu0 0.0
      %803 = vmatpush1.msra.mxu0 0.0
      %804 = vmatprep.subr.mxu0 0.0
      %805 = vmatpush1.msra.mxu0 0.0
      %806 = vmatprep.subr.mxu0 0.0
      %807 = vmatpush1.msra.mxu0 0.0
      %808 = vmatprep.subr.mxu0 0.0
      %809 = vmatpush1.msra.mxu0 0.0
      %810 = vmatprep.subr.mxu0 0.0
      %811 = vmatpush1.msra.mxu0 0.0
      %812 = vmatprep.subr.mxu0 0.0
      %813 = vmatpush1.msra.mxu0 0.0
      %814 = vmatprep.subr.mxu0 0.0
      %815 = vmatpush1.msra.mxu0 0.0
      %816 = vmatprep.mubr.f32.mxu0 0.0
      %v817 = vand.u32 %v301, 4294901760
      %v818 = vsub.f32 %v301, %v817
      %v819 = vand.u32 %v818, 4294901760
      %820 = vmatmul.mubr.f32.gmra.mrb[0].mxu0 %v819
      %v821 = vpop.f32.mrb[0].mxu0
      %v822 = vadd.f32 %v712, %v821
      %v823 = vpop.f32.mrb[0].mxu0
      %824 = vmatprep.mubr.f32.mxu0 0.0
      %v825 = vand.u32 %v302, 4294901760
      %v826 = vsub.f32 %v302, %v825
      %v827 = vand.u32 %v826, 4294901760
      %828 = vmatmul.mubr.f32.gmra.mrb[0].mxu0 %v827
      %v829 = vpop.f32.mrb[0].mxu0
      %v830 = vadd.f32 %v719, %v829
      %v831 = vpop.f32.mrb[0].mxu0
      %832 = vmatprep.mubr.f32.mxu0 0.0
      %v833 = vand.u32 %v303, 4294901760
      %v834 = vsub.f32 %v303, %v833
      %v835 = vand.u32 %v834, 4294901760
      %836 = vmatmul.mubr.f32.gmra.mrb[0].mxu0 %v835
      %v837 = vpop.f32.mrb[0].mxu0
      %v838 = vadd.f32 %v726, %v837
      %v839 = vpop.f32.mrb[0].mxu0
      %840 = vmatprep.mubr.f32.mxu0 0.0
      %v841 = vand.u32 %v304, 4294901760
      %v842 = vsub.f32 %v304, %v841
      %v843 = vand.u32 %v842, 4294901760
      %844 = vmatmul.mubr.f32.gmra.mrb[0].mxu0 %v843
      %v845 = vpop.f32.mrb[0].mxu0
      %v846 = vadd.f32 %v733, %v845
      %v847 = vpop.f32.mrb[0].mxu0
      %848 = vdwg.mxu0
      %849 = vmatprep.subr.mxu0 0.0
      %v850 = vand.u32 %v305, 4294901760
      %v851 = vsub.f32 %v305, %v850
      %v852 = vand.u32 %v851, 4294901760
      %853 = vmatpush1.msra.mxu0 %v852
      %854 = vmatprep.subr.mxu0 0.0
      %v855 = vand.u32 %v306, 4294901760
      %v856 = vsub.f32 %v306, %v855
      %v857 = vand.u32 %v856, 4294901760
      %858 = vmatpush1.msra.mxu0 %v857
      %859 = vmatprep.subr.mxu0 0.0
      %v860 = vand.u32 %v307, 4294901760
      %v861 = vsub.f32 %v307, %v860
      %v862 = vand.u32 %v861, 4294901760
      %863 = vmatpush1.msra.mxu0 %v862
      %864 = vmatprep.subr.mxu0 0.0
      %v865 = vand.u32 %v308, 4294901760
      %v866 = vsub.f32 %v308, %v865
      %v867 = vand.u32 %v866, 4294901760
      %868 = vmatpush1.msra.mxu0 %v867
      %869 = vmatprep.subr.mxu0 0.0
      %v870 = vand.u32 %v309, 4294901760
      %v871 = vsub.f32 %v309, %v870
      %v872 = vand.u32 %v871, 4294901760
      %873 = vmatpush1.msra.mxu0 %v872
      %874 = vmatprep.subr.mxu0 0.0
      %v875 = vand.u32 %v310, 4294901760
      %v876 = vsub.f32 %v310, %v875
      %v877 = vand.u32 %v876, 4294901760
      %878 = vmatpush1.msra.mxu0 %v877
      %879 = vmatprep.subr.mxu0 0.0
      %v880 = vand.u32 %v311, 4294901760
      %v881 = vsub.f32 %v311, %v880
      %v882 = vand.u32 %v881, 4294901760
      %883 = vmatpush1.msra.mxu0 %v882
      %884 = vmatprep.subr.mxu0 0.0
      %v885 = vand.u32 %v312, 4294901760
      %v886 = vsub.f32 %v312, %v885
      %v887 = vand.u32 %v886, 4294901760
      %888 = vmatpush1.msra.mxu0 %v887
      %889 = vmatprep.subr.mxu0 0.0
      %v890 = vand.u32 %v313, 4294901760
      %v891 = vsub.f32 %v313, %v890
      %v892 = vand.u32 %v891, 4294901760
      %893 = vmatpush1.msra.mxu0 %v892
      %894 = vmatprep.subr.mxu0 0.0
      %v895 = vand.u32 %v314, 4294901760
      %v896 = vsub.f32 %v314, %v895
      %v897 = vand.u32 %v896, 4294901760
      %898 = vmatpush1.msra.mxu0 %v897
      %899 = vmatprep.subr.mxu0 0.0
      %v900 = vand.u32 %v315, 4294901760
      %v901 = vsub.f32 %v315, %v900
      %v902 = vand.u32 %v901, 4294901760
      %903 = vmatpush1.msra.mxu0 %v902
      %904 = vmatprep.subr.mxu0 0.0
      %v905 = vand.u32 %v316, 4294901760
      %v906 = vsub.f32 %v316, %v905
      %v907 = vand.u32 %v906, 4294901760
      %908 = vmatpush1.msra.mxu0 %v907
      %909 = vmatprep.subr.mxu0 0.0
      %v910 = vand.u32 %v317, 4294901760
      %v911 = vsub.f32 %v317, %v910
      %v912 = vand.u32 %v911, 4294901760
      %913 = vmatpush1.msra.mxu0 %v912
      %914 = vmatprep.subr.mxu0 0.0
      %v915 = vand.u32 %v318, 4294901760
      %v916 = vsub.f32 %v318, %v915
      %v917 = vand.u32 %v916, 4294901760
      %918 = vmatpush1.msra.mxu0 %v917
      %919 = vmatprep.subr.mxu0 0.0
      %v920 = vand.u32 %v319, 4294901760
      %v921 = vsub.f32 %v319, %v920
      %v922 = vand.u32 %v921, 4294901760
      %923 = vmatpush1.msra.mxu0 %v922
      %924 = vmatprep.subr.mxu0 0.0
      %v925 = vand.u32 %v320, 4294901760
      %v926 = vsub.f32 %v320, %v925
      %v927 = vand.u32 %v926, 4294901760
      %928 = vmatpush1.msra.mxu0 %v927
      %929 = vmatprep.subr.mxu0 0.0
      %930 = vmatpush1.msra.mxu0 0.0
      %931 = vmatprep.subr.mxu0 0.0
      %932 = vmatpush1.msra.mxu0 0.0
      %933 = vmatprep.subr.mxu0 0.0
      %934 = vmatpush1.msra.mxu0 0.0
      %935 = vmatprep.subr.mxu0 0.0
      %936 = vmatpush1.msra.mxu0 0.0
      %937 = vmatprep.subr.mxu0 0.0
      %938 = vmatpush1.msra.mxu0 0.0
      %939 = vmatprep.subr.mxu0 0.0
      %940 = vmatpush1.msra.mxu0 0.0
      %941 = vmatprep.subr.mxu0 0.0
      %942 = vmatpush1.msra.mxu0 0.0
      %943 = vmatprep.subr.mxu0 0.0
      %944 = vmatpush1.msra.mxu0 0.0
      %945 = vmatprep.subr.mxu0 0.0
      %946 = vmatpush1.msra.mxu0 0.0
      %947 = vmatprep.subr.mxu0 0.0
      %948 = vmatpush1.msra.mxu0 0.0
      %949 = vmatprep.subr.mxu0 0.0
      %950 = vmatpush1.msra.mxu0 0.0
      %951 = vmatprep.subr.mxu0 0.0
      %952 = vmatpush1.msra.mxu0 0.0
      %953 = vmatprep.subr.mxu0 0.0
      %954 = vmatpush1.msra.mxu0 0.0
      %955 = vmatprep.subr.mxu0 0.0
      %956 = vmatpush1.msra.mxu0 0.0
      %957 = vmatprep.subr.mxu0 0.0
      %958 = vmatpush1.msra.mxu0 0.0
      %959 = vmatprep.subr.mxu0 0.0
      %960 = vmatpush1.msra.mxu0 0.0
      %961 = vmatprep.mubr.f32.mxu0 0.0
      %v962 = vand.u32 %v301, 4294901760
      %963 = vmatmul.mubr.f32.gmra.mrb[0].mxu0 %v962
      %v964 = vpop.f32.mrb[0].mxu0
      %v965 = vadd.f32 %v822, %v964
      %v966 = vpop.f32.mrb[0].mxu0
      %967 = vmatprep.mubr.f32.mxu0 0.0
      %v968 = vand.u32 %v302, 4294901760
      %969 = vmatmul.mubr.f32.gmra.mrb[0].mxu0 %v968
      %v970 = vpop.f32.mrb[0].mxu0
      %v971 = vadd.f32 %v830, %v970
      %v972 = vpop.f32.mrb[0].mxu0
      %973 = vmatprep.mubr.f32.mxu0 0.0
      %v974 = vand.u32 %v303, 4294901760
      %975 = vmatmul.mubr.f32.gmra.mrb[0].mxu0 %v974
      %v976 = vpop.f32.mrb[0].mxu0
      %v977 = vadd.f32 %v838, %v976
      %v978 = vpop.f32.mrb[0].mxu0
      %979 = vmatprep.mubr.f32.mxu0 0.0
      %v980 = vand.u32 %v304, 4294901760
      %981 = vmatmul.mubr.f32.gmra.mrb[0].mxu0 %v980
      %v982 = vpop.f32.mrb[0].mxu0
      %v983 = vadd.f32 %v846, %v982
      %v984 = vpop.f32.mrb[0].mxu0
      %985 = vdwg.mxu0
      %986 = vmatprep.subr.mxu0 0.0
      %v987 = vand.u32 %v305, 4294901760
      %988 = vmatpush1.msra.mxu0 %v987
      %989 = vmatprep.subr.mxu0 0.0
      %v990 = vand.u32 %v306, 4294901760
      %991 = vmatpush1.msra.mxu0 %v990
      %992 = vmatprep.subr.mxu0 0.0
      %v993 = vand.u32 %v307, 4294901760
      %994 = vmatpush1.msra.mxu0 %v993
      %995 = vmatprep.subr.mxu0 0.0
      %v996 = vand.u32 %v308, 4294901760
      %997 = vmatpush1.msra.mxu0 %v996
      %998 = vmatprep.subr.mxu0 0.0
      %v999 = vand.u32 %v309, 4294901760
      %1000 = vmatpush1.msra.mxu0 %v999
      %1001 = vmatprep.subr.mxu0 0.0
      %v1002 = vand.u32 %v310, 4294901760
      %1003 = vmatpush1.msra.mxu0 %v1002
      %1004 = vmatprep.subr.mxu0 0.0
      %v1005 = vand.u32 %v311, 4294901760
      %1006 = vmatpush1.msra.mxu0 %v1005
      %1007 = vmatprep.subr.mxu0 0.0
      %v1008 = vand.u32 %v312, 4294901760
      %1009 = vmatpush1.msra.mxu0 %v1008
      %1010 = vmatprep.subr.mxu0 0.0
      %v1011 = vand.u32 %v313, 4294901760
      %1012 = vmatpush1.msra.mxu0 %v1011
      %1013 = vmatprep.subr.mxu0 0.0
      %v1014 = vand.u32 %v314, 4294901760
      %1015 = vmatpush1.msra.mxu0 %v1014
      %1016 = vmatprep.subr.mxu0 0.0
      %v1017 = vand.u32 %v315, 4294901760
      %1018 = vmatpush1.msra.mxu0 %v1017
      %1019 = vmatprep.subr.mxu0 0.0
      %v1020 = vand.u32 %v316, 4294901760
      %1021 = vmatpush1.msra.mxu0 %v1020
      %1022 = vmatprep.subr.mxu0 0.0
      %v1023 = vand.u32 %v317, 4294901760
      %1024 = vmatpush1.msra.mxu0 %v1023
      %1025 = vmatprep.subr.mxu0 0.0
      %v1026 = vand.u32 %v318, 4294901760
      %1027 = vmatpush1.msra.mxu0 %v1026
      %1028 = vmatprep.subr.mxu0 0.0
      %v1029 = vand.u32 %v319, 4294901760
      %1030 = vmatpush1.msra.mxu0 %v1029
      %1031 = vmatprep.subr.mxu0 0.0
      %v1032 = vand.u32 %v320, 4294901760
      %1033 = vmatpush1.msra.mxu0 %v1032
      %1034 = vmatprep.subr.mxu0 0.0
      %1035 = vmatpush1.msra.mxu0 0.0
      %1036 = vmatprep.subr.mxu0 0.0
      %1037 = vmatpush1.msra.mxu0 0.0
      %1038 = vmatprep.subr.mxu0 0.0
      %1039 = vmatpush1.msra.mxu0 0.0
      %1040 = vmatprep.subr.mxu0 0.0
      %1041 = vmatpush1.msra.mxu0 0.0
      %1042 = vmatprep.subr.mxu0 0.0
      %1043 = vmatpush1.msra.mxu0 0.0
      %1044 = vmatprep.subr.mxu0 0.0
      %1045 = vmatpush1.msra.mxu0 0.0
      %1046 = vmatprep.subr.mxu0 0.0
      %1047 = vmatpush1.msra.mxu0 0.0
      %1048 = vmatprep.subr.mxu0 0.0
      %1049 = vmatpush1.msra.mxu0 0.0
      %1050 = vmatprep.subr.mxu0 0.0
      %1051 = vmatpush1.msra.mxu0 0.0
      %1052 = vmatprep.subr.mxu0 0.0
      %1053 = vmatpush1.msra.mxu0 0.0
      %1054 = vmatprep.subr.mxu0 0.0
      %1055 = vmatpush1.msra.mxu0 0.0
      %1056 = vmatprep.subr.mxu0 0.0
      %1057 = vmatpush1.msra.mxu0 0.0
      %1058 = vmatprep.subr.mxu0 0.0
      %1059 = vmatpush1.msra.mxu0 0.0
      %1060 = vmatprep.subr.mxu0 0.0
      %1061 = vmatpush1.msra.mxu0 0.0
      %1062 = vmatprep.subr.mxu0 0.0
      %1063 = vmatpush1.msra.mxu0 0.0
      %1064 = vmatprep.subr.mxu0 0.0
      %1065 = vmatpush1.msra.mxu0 0.0
      %1066 = vmatprep.mubr.f32.mxu0 0.0
      %v1067 = vand.u32 %v301, 4294901760
      %1068 = vmatmul.mubr.f32.gmra.mrb[0].mxu0 %v1067
      %v1069 = vpop.f32.mrb[0].mxu0
      %v1070 = vadd.f32 %v965, %v1069
      %v1071 = vpop.f32.mrb[0].mxu0
      %1072 = vmatprep.mubr.f32.mxu0 0.0
      %v1073 = vand.u32 %v302, 4294901760
      %1074 = vmatmul.mubr.f32.gmra.mrb[0].mxu0 %v1073
      %v1075 = vpop.f32.mrb[0].mxu0
      %v1076 = vadd.f32 %v971, %v1075
      %v1077 = vpop.f32.mrb[0].mxu0
      %1078 = vmatprep.mubr.f32.mxu0 0.0
      %v1079 = vand.u32 %v303, 4294901760
      %1080 = vmatmul.mubr.f32.gmra.mrb[0].mxu0 %v1079
      %v1081 = vpop.f32.mrb[0].mxu0
      %v1082 = vadd.f32 %v977, %v1081
      %v1083 = vpop.f32.mrb[0].mxu0
      %1084 = vmatprep.mubr.f32.mxu0 0.0
      %v1085 = vand.u32 %v304, 4294901760
      %1086 = vmatmul.mubr.f32.gmra.mrb[0].mxu0 %v1085
      %v1087 = vpop.f32.mrb[0].mxu0
      %v1088 = vadd.f32 %v983, %v1087
      %v1089 = vpop.f32.mrb[0].mxu0
      %1090 = vdwg.mxu0
      %vm1091 = vcmask 261120
      %1092 = vst.msk [vmem:[%s145] sm:$0xff] %vm1091, %v1070
      %1093 = vst.msk [vmem:[%s145 + $0x8] sm:$0xff] %vm1091, %v1076
      %1094 = vst.msk [vmem:[%s145 + $0x10] sm:$0xff] %vm1091, %v1082
      %1095 = vst.msk [vmem:[%s145 + $0x18] sm:$0xff] %vm1091, %v1088
      %s1096 = smul.u32 4, %s13
      %p1097 = scmp.lt.s32.totalorder %s1096, 7
      %s1098 = scalar_select %p1097, %s1096, 7
      %s1099 = smul.addr %s1098, 8
      %s1100 = scalar_lea.vmem %s2, %s1099
      // Predicated region
      $region29: #{tpu_custom_call.1} parent=27 // pred_check
        %p1101 = pneg %p78
      $region30: #{tpu_custom_call.1} parent=27 // pred_check_branch
        %1103 = sbr.rel (%p1101) target = $region32
      $region31: #{tpu_custom_call.1} parent=27 // pred_region
        %s1104 = smul.u32 4, %s13
      $region32: #{tpu_custom_call.1} parent=27 // pred_fallthru
        _
    $region28: #{tpu_custom_call.1} parent=5 // pred_fallthru
      _
    %p1105 = scmp.le.s32.totalorder 2, %s8
    // Predicated region
    $region33: #{tpu_custom_call.1} parent=5 // pred_check
      %p1106 = pneg %p1105
    $region34: #{tpu_custom_call.1} parent=5 // pred_check_branch
      %1108 = sbr.rel (%p1106) target = $region36
    $region35: #{tpu_custom_call.1} parent=5 // pred_region
      %s1109 = ssub.s32 %s8, 2
      // Predicated region
      $region37: #{tpu_custom_call.1} parent=35 // pred_check
        %p1110 = pneg %p84
      $region38: #{tpu_custom_call.1} parent=35 // pred_check_branch
        %1112 = sbr.rel (%p1110) target = $region40
      $region39: #{tpu_custom_call.1} parent=35 // pred_region
        %s1113 = smul.u32 4, %s14
        %p1114 = scmp.lt.s32.totalorder %s1113, 7
        %s1115 = scalar_select %p1114, %s1113, 7
        %s1116 = smul.addr %s1115, 8
        %s1117 = scalar_lea.vmem %s2, %s1116
      $region40: #{tpu_custom_call.1} parent=35 // pred_fallthru
        _
    $region36: #{tpu_custom_call.1} parent=5 // pred_fallthru
      _
  $region6: #{tpu_custom_call.1} parent=0 // loop_footer
    %s12 = sadd.s32 1, %s8
  $region7: #{tpu_custom_call.1} parent=0 // loop_footer_branch
    %7 = sbr.rel target = $region3
  $region8: #{tpu_custom_call.1} parent=0 // loop_exit
    _

</llo_original>
